<compile_context>
chip_gen: v7x
topology: tpu7x:2x2x1
jax: 0.10.0
libtpu: 0.0.40
codegen_flags: <defaults>
</compile_context>

<pallas_src>
import functools
from typing import NamedTuple

import numpy as np
import jax
import jax.numpy as jnp
from jax.experimental import pallas as pl
from jax.experimental.pallas import tpu as pltpu


def _round_up(x, m):
    return ((x + m - 1) // m) * m


# -----------------------------------------------------------------------------
# Kernel
# -----------------------------------------------------------------------------
def actor_kernel(state_ref, wslab_ref, vec_ref, out_ref, *,
                 state_size, hid1_p, hid2_p, act_p, r_w2, r_w3):
    """One grid step = one full BatchNorm batch (one BN group).

    wslab_ref (bf16): rows [0:state_size)      -> fc1 weight (in, hid1_p)
                      rows [r_w2:r_w2+hid1_p)  -> fc2 weight (hid1_p, hid2_p)
                      rows [r_w3:r_w3+hid2_p)  -> fc3 weight (hid2_p, act_p)
    vec_ref (f32)   : row 0 = fc3 bias (lane-padded with 0)
                      rows 1/2 = bn1 gamma/beta, rows 3/4 = bn2 gamma/beta
                      (gamma padded with 1, beta with 0 -> full-vreg BN math)
    """
    eps = jnp.float32(1e-5)

    def batchnorm(x, gamma, beta):
        # Training-mode BatchNorm1d: biased variance over the batch axis.
        mean = jnp.mean(x, axis=0, keepdims=True)
        xc = x - mean
        var = jnp.mean(xc * xc, axis=0, keepdims=True)
        return xc * jax.lax.rsqrt(var + eps) * gamma + beta

    # Static slices of the resident constant slab (zero-cost views).
    w1 = wslab_ref[0:state_size, 0:hid1_p]                 # bf16
    w2 = wslab_ref[r_w2:r_w2 + hid1_p, 0:hid2_p]           # bf16
    w3 = wslab_ref[r_w3:r_w3 + hid2_p, 0:act_p]            # bf16

    vec = vec_ref[...]                                     # f32
    b3 = vec[0:1, 0:act_p]
    g1 = vec[1:2, 0:hid1_p]
    be1 = vec[2:3, 0:hid1_p]
    g2 = vec[3:4, 0:hid2_p]
    be2 = vec[4:5, 0:hid2_p]

    state = state_ref[...].astype(jnp.bfloat16)

    # fc1 -> bn1 -> relu   (fc1 bias exactly absorbed by the batch-mean subtraction)
    h1 = jnp.dot(state, w1, preferred_element_type=jnp.float32)
    h1 = jnp.maximum(batchnorm(h1, g1, be1), 0.0)

    # fc2 -> bn2 -> relu   (fc2 bias absorbed for the same reason)
    h2 = jnp.dot(h1.astype(jnp.bfloat16), w2, preferred_element_type=jnp.float32)
    h2 = jnp.maximum(batchnorm(h2, g2, be2), 0.0)

    # fc3 + bias -> tanh   (lanes beyond action_size are tanh(0)=0, sliced off outside)
    out = jnp.dot(h2.astype(jnp.bfloat16), w3, preferred_element_type=jnp.float32) + b3
    out_ref[...] = jnp.tanh(out)


# -----------------------------------------------------------------------------
# One-time parameter packing (per parameter update, NOT per forward call)
# -----------------------------------------------------------------------------
class ActorPrepared(NamedTuple):
    wslab: jax.Array          # bf16 (sp + hid1_p + hid2_p, slab_w)
    vec: jax.Array            # f32  (8, slab_w)
    state_size: int
    action_size: int
    hid1_p: int
    hid2_p: int
    act_p: int
    r_w2: int
    r_w3: int


def prepare_actor_params(params):
    (w1, b1, w2, b2, w3, b3, g0, be0, g1, be1, g2, be2) = params
    del b1, b2, g0, be0  # b1/b2 absorbed by training-mode BN; bn0 output is unused

    state_size, hid1 = w1.shape
    hid2 = w2.shape[1]
    action_size = w3.shape[1]

    sp = _round_up(state_size, 8)             # sublane-aligned fc1 section
    hid1_p = _round_up(hid1, 128)
    hid2_p = _round_up(hid2, 128)
    act_p = _round_up(action_size, 128)       # output lane width decoupled from hid width
    slab_w = max(hid1_p, hid2_p, act_p)

    wslab = np.zeros((sp + hid1_p + hid2_p, slab_w), np.float32)
    wslab[0:state_size, 0:hid1] = np.asarray(w1)
    r_w2 = sp
    wslab[r_w2:r_w2 + hid1, 0:hid2] = np.asarray(w2)
    r_w3 = sp + hid1_p
    wslab[r_w3:r_w3 + hid2, 0:action_size] = np.asarray(w3)

    vec = np.zeros((8, slab_w), np.float32)
    vec[0, 0:action_size] = np.asarray(b3).reshape(-1)
    vec[1, :] = 1.0
    vec[1, 0:hid1] = np.asarray(g1).reshape(-1)
    vec[2, 0:hid1] = np.asarray(be1).reshape(-1)
    vec[3, :] = 1.0
    vec[3, 0:hid2] = np.asarray(g2).reshape(-1)
    vec[4, 0:hid2] = np.asarray(be2).reshape(-1)

    return ActorPrepared(
        wslab=jnp.asarray(wslab, jnp.bfloat16),
        vec=jnp.asarray(vec, jnp.float32),
        state_size=state_size, action_size=action_size,
        hid1_p=hid1_p, hid2_p=hid2_p, act_p=act_p,
        r_w2=r_w2, r_w3=r_w3)


# -----------------------------------------------------------------------------
# Forward wrapper: one pallas_call, grid over fused BN groups
# -----------------------------------------------------------------------------
def actor_forward(state, prepared: ActorPrepared, *, bn_group_size=None):
    """state: (batch, state_size).  batch must be a whole number of BN groups
    of size `bn_group_size` (default: one group = the full batch, exactly the
    PyTorch module's forward).  BN statistics are computed per group."""
    batch, state_size = state.shape
    assert state_size == prepared.state_size
    if bn_group_size is None:
        bn_group_size = batch
    assert batch % bn_group_size == 0, "batch must be a whole number of BN groups"
    num_groups = batch // bn_group_size
    assert num_groups == 1 or bn_group_size % 8 == 0, \
        "multi-group fusion needs a sublane-aligned group size"

    kernel = functools.partial(
        actor_kernel,
        state_size=state_size,
        hid1_p=prepared.hid1_p,
        hid2_p=prepared.hid2_p,
        act_p=prepared.act_p,
        r_w2=prepared.r_w2,
        r_w3=prepared.r_w3,
    )

    out_padded = pl.pallas_call(
        kernel,
        out_shape=jax.ShapeDtypeStruct((batch, prepared.act_p), jnp.float32),
        grid=(num_groups,),
        in_specs=[
            # per-group state block streams with the grid
            pl.BlockSpec((bn_group_size, state_size), lambda g: (g, 0)),
            # constants: index_map always (0,0) -> resident in VMEM across the grid
            pl.BlockSpec(prepared.wslab.shape, lambda g: (0, 0)),
            pl.BlockSpec(prepared.vec.shape, lambda g: (0, 0)),
        ],
        out_specs=pl.BlockSpec((bn_group_size, prepared.act_p), lambda g: (g, 0)),
        compiler_params=pltpu.CompilerParams(
            dimension_semantics=("parallel",)),  # shards groups across v7x's 2 TCs
    )(state, prepared.wslab, prepared.vec)

    # lane-dense (unmasked) store inside the kernel; trim padding outside
    return out_padded[:, :prepared.action_size]


# -----------------------------------------------------------------------------
# Parameter init + pure-JAX reference of the FULL PyTorch forward
# -----------------------------------------------------------------------------
def init_actor_params(key, state_size, action_size, hid1=128, hid2=128):
    """Mirrors Actor.reset_parameters():
       fc1/fc2 weights ~ U(-1/sqrt(out_features), ...)   (fan_in = weight.size()[0])
       fc3 weights ~ U(-3e-3, 3e-3)
       biases keep PyTorch Linear default U(-1/sqrt(in_features), ...)
       BatchNorm gamma=1, beta=0."""
    ks = jax.random.split(key, 6)

    lim1 = 1.0 / np.sqrt(hid1)
    lim2 = 1.0 / np.sqrt(hid2)

    # weights stored (in, out) for x @ W
    w1 = jax.random.uniform(ks[0], (state_size, hid1), jnp.float32, -lim1, lim1)
    w2 = jax.random.uniform(ks[1], (hid1, hid2), jnp.float32, -lim2, lim2)
    w3 = jax.random.uniform(ks[2], (hid2, action_size), jnp.float32, -3e-3, 3e-3)

    blim1 = 1.0 / np.sqrt(state_size)
    blim2 = 1.0 / np.sqrt(hid1)
    blim3 = 1.0 / np.sqrt(hid2)
    b1 = jax.random.uniform(ks[3], (1, hid1), jnp.float32, -blim1, blim1)
    b2 = jax.random.uniform(ks[4], (1, hid2), jnp.float32, -blim2, blim2)
    b3 = jax.random.uniform(ks[5], (1, action_size), jnp.float32, -blim3, blim3)

    g0 = jnp.ones((1, state_size), jnp.float32)
    be0 = jnp.zeros((1, state_size), jnp.float32)
    g1 = jnp.ones((1, hid1), jnp.float32)
    be1 = jnp.zeros((1, hid1), jnp.float32)
    g2 = jnp.ones((1, hid2), jnp.float32)
    be2 = jnp.zeros((1, hid2), jnp.float32)

    return (w1, b1, w2, b2, w3, b3, g0, be0, g1, be1, g2, be2)


def actor_reference(state, params):
    """Pure-JAX f32 reference of the FULL PyTorch forward (including bn0 and the
    fc1/fc2 biases) — validates that the kernel's simplifications are exact
    (only bf16-matmul rounding differs)."""
    (w1, b1, w2, b2, w3, b3, g0, be0, g1, be1, g2, be2) = params
    eps = 1e-5

    def bn(x, g, b):
        m = jnp.mean(x, axis=0, keepdims=True)
        v = jnp.mean((x - m) ** 2, axis=0, keepdims=True)
        return (x - m) / jnp.sqrt(v + eps) * g + b

    _ = bn(state, g0, be0)                       # discarded, as in the reference
    h1 = jax.nn.relu(bn(state @ w1 + b1, g1, be1))
    h2 = jax.nn.relu(bn(h1 @ w2 + b2, g2, be2))
    return jnp.tanh(h2 @ w3 + b3)


if __name__ == "__main__":
    batch = 8
    state_size = 16
    action_size = 4

    key = jax.random.PRNGKey(0)
    pkey, xkey, xkey2 = jax.random.split(key, 3)

    params = init_actor_params(pkey, state_size, action_size)
    prepared = prepare_actor_params(params)      # one-time packing

    # Tolerance sized for bf16-in / f32-acc matmuls vs. the all-f32 reference.
    ATOL, RTOL = 1e-2, 1e-2

    # --- single BN batch: exactly the PyTorch module's forward ---
    state = jax.random.normal(xkey, (batch, state_size), jnp.float32)
    out = jax.block_until_ready(actor_forward(state, prepared))
    ref = actor_reference(state, params)
    assert out.shape == (batch, action_size), out.shape
    assert jnp.allclose(out, ref, atol=ATOL, rtol=RTOL), \
        float(jnp.max(jnp.abs(out - ref)))

    # --- fused call: 4 independent BN groups of 8 rows in one pallas_call ---
    states4 = jax.random.normal(xkey2, (4 * batch, state_size), jnp.float32)
    out4 = jax.block_until_ready(
        actor_forward(states4, prepared, bn_group_size=batch))
    ref4 = jnp.concatenate(
        [actor_reference(states4[i * batch:(i + 1) * batch], params)
         for i in range(4)], axis=0)
    assert out4.shape == (4 * batch, action_size), out4.shape
    assert jnp.allclose(out4, ref4, atol=ATOL, rtol=RTOL), \
        float(jnp.max(jnp.abs(out4 - ref4)))

    print("KERNEL_OK")
</pallas_src>

<mosaic_0001>
module attributes {stable_mosaic.version = 11 : i64} {
  func.func @actor_kernel(%arg0: i32, %arg1: memref<8x16xf32, #tpu.memory_space<vmem>>, %arg2: memref<272x128xbf16, #tpu.memory_space<vmem>>, %arg3: memref<8x128xf32, #tpu.memory_space<vmem>>, %arg4: memref<8x128xf32, #tpu.memory_space<vmem>>) attributes {dimension_semantics = [#tpu.dimension_semantics<parallel>], iteration_bounds = array<i64: 1>, scalar_prefetch = 0 : i64, scratch_operands = 0 : i64, tpu.core_type = #tpu.core_type<tc>, window_params = [{transform_indices = @transform_0, window_bounds = array<i64: 8, 16>}, {pipeline_mode = #tpu.pipeline_mode<synchronous>, transform_indices = @transform_1, window_bounds = array<i64: 272, 128>}, {pipeline_mode = #tpu.pipeline_mode<synchronous>, transform_indices = @transform_2, window_bounds = array<i64: 8, 128>}, {transform_indices = @transform_3, window_bounds = array<i64: 8, 128>}]} {
    %c0 = arith.constant 0 : index
    %c0_0 = arith.constant 0 : index
    %0 = vector.load %arg2[%c0, %c0_0] : memref<272x128xbf16, #tpu.memory_space<vmem>>, vector<16x128xbf16>
    %c16 = arith.constant 16 : index
    %c0_1 = arith.constant 0 : index
    %1 = vector.load %arg2[%c16, %c0_1] : memref<272x128xbf16, #tpu.memory_space<vmem>>, vector<128x128xbf16>
    %c144 = arith.constant 144 : index
    %c0_2 = arith.constant 0 : index
    %2 = vector.load %arg2[%c144, %c0_2] : memref<272x128xbf16, #tpu.memory_space<vmem>>, vector<128x128xbf16>
    %c0_3 = arith.constant 0 : index
    %c0_4 = arith.constant 0 : index
    %3 = vector.load %arg3[%c0_3, %c0_4] : memref<8x128xf32, #tpu.memory_space<vmem>>, vector<8x128xf32>
    %4 = vector.extract_strided_slice %3 {offsets = [0, 0], sizes = [1, 128], strides = [1, 1]} : vector<8x128xf32> to vector<1x128xf32>
    %5 = vector.extract_strided_slice %3 {offsets = [1, 0], sizes = [1, 128], strides = [1, 1]} : vector<8x128xf32> to vector<1x128xf32>
    %6 = vector.extract_strided_slice %3 {offsets = [2, 0], sizes = [1, 128], strides = [1, 1]} : vector<8x128xf32> to vector<1x128xf32>
    %7 = vector.extract_strided_slice %3 {offsets = [3, 0], sizes = [1, 128], strides = [1, 1]} : vector<8x128xf32> to vector<1x128xf32>
    %8 = vector.extract_strided_slice %3 {offsets = [4, 0], sizes = [1, 128], strides = [1, 1]} : vector<8x128xf32> to vector<1x128xf32>
    %c0_5 = arith.constant 0 : index
    %c0_6 = arith.constant 0 : index
    %9 = vector.load %arg1[%c0_5, %c0_6] : memref<8x16xf32, #tpu.memory_space<vmem>>, vector<8x16xf32>
    %10 = arith.truncf %9 : vector<8x16xf32> to vector<8x16xbf16>
    %cst = arith.constant dense<0.000000e+00> : vector<8x128xf32>
    %11 = tpu.matmul %10, %0, %cst {dimension_numbers = #tpu.dot_dimension_numbers<[1], [0], [0], [1], [0, 0, 1, 1], [], []>} : vector<8x16xbf16>, vector<16x128xbf16>, vector<8x128xf32> -> vector<8x128xf32>
    %cst_7 = arith.constant dense<0.000000e+00> : vector<128xf32>
    %12 = vector.multi_reduction <add>, %11, %cst_7 [0] : vector<8x128xf32> to vector<128xf32>
    %13 = vector.shape_cast %12 : vector<128xf32> to vector<1x128xf32>
    %cst_8 = arith.constant 8.000000e+00 : f32
    %14 = vector.broadcast %cst_8 : f32 to vector<1x128xf32>
    %15 = arith.divf %13, %14 : vector<1x128xf32>
    %16 = vector.broadcast %15 : vector<1x128xf32> to vector<8x128xf32>
    %17 = arith.subf %11, %16 : vector<8x128xf32>
    %18 = arith.mulf %17, %17 : vector<8x128xf32>
    %cst_9 = arith.constant dense<0.000000e+00> : vector<128xf32>
    %19 = vector.multi_reduction <add>, %18, %cst_9 [0] : vector<8x128xf32> to vector<128xf32>
    %20 = vector.shape_cast %19 : vector<128xf32> to vector<1x128xf32>
    %cst_10 = arith.constant 8.000000e+00 : f32
    %21 = vector.broadcast %cst_10 : f32 to vector<1x128xf32>
    %22 = arith.divf %20, %21 : vector<1x128xf32>
    %cst_11 = arith.constant 9.99999974E-6 : f32
    %23 = vector.broadcast %cst_11 : f32 to vector<1x128xf32>
    %24 = arith.addf %22, %23 : vector<1x128xf32>
    %25 = math.rsqrt %24 : vector<1x128xf32>
    %26 = vector.broadcast %25 : vector<1x128xf32> to vector<8x128xf32>
    %27 = arith.mulf %17, %26 : vector<8x128xf32>
    %28 = vector.broadcast %5 : vector<1x128xf32> to vector<8x128xf32>
    %29 = arith.mulf %27, %28 : vector<8x128xf32>
    %30 = vector.broadcast %6 : vector<1x128xf32> to vector<8x128xf32>
    %31 = arith.addf %29, %30 : vector<8x128xf32>
    %cst_12 = arith.constant 0.000000e+00 : f32
    %32 = vector.broadcast %cst_12 : f32 to vector<8x128xf32>
    %33 = arith.maximumf %31, %32 : vector<8x128xf32>
    %34 = arith.truncf %33 : vector<8x128xf32> to vector<8x128xbf16>
    %cst_13 = arith.constant dense<0.000000e+00> : vector<8x128xf32>
    %35 = tpu.matmul %34, %1, %cst_13 {dimension_numbers = #tpu.dot_dimension_numbers<[1], [0], [0], [1], [0, 0, 1, 1], [], []>} : vector<8x128xbf16>, vector<128x128xbf16>, vector<8x128xf32> -> vector<8x128xf32>
    %cst_14 = arith.constant dense<0.000000e+00> : vector<128xf32>
    %36 = vector.multi_reduction <add>, %35, %cst_14 [0] : vector<8x128xf32> to vector<128xf32>
    %37 = vector.shape_cast %36 : vector<128xf32> to vector<1x128xf32>
    %cst_15 = arith.constant 8.000000e+00 : f32
    %38 = vector.broadcast %cst_15 : f32 to vector<1x128xf32>
    %39 = arith.divf %37, %38 : vector<1x128xf32>
    %40 = vector.broadcast %39 : vector<1x128xf32> to vector<8x128xf32>
    %41 = arith.subf %35, %40 : vector<8x128xf32>
    %42 = arith.mulf %41, %41 : vector<8x128xf32>
    %cst_16 = arith.constant dense<0.000000e+00> : vector<128xf32>
    %43 = vector.multi_reduction <add>, %42, %cst_16 [0] : vector<8x128xf32> to vector<128xf32>
    %44 = vector.shape_cast %43 : vector<128xf32> to vector<1x128xf32>
    %cst_17 = arith.constant 8.000000e+00 : f32
    %45 = vector.broadcast %cst_17 : f32 to vector<1x128xf32>
    %46 = arith.divf %44, %45 : vector<1x128xf32>
    %cst_18 = arith.constant 9.99999974E-6 : f32
    %47 = vector.broadcast %cst_18 : f32 to vector<1x128xf32>
    %48 = arith.addf %46, %47 : vector<1x128xf32>
    %49 = math.rsqrt %48 : vector<1x128xf32>
    %50 = vector.broadcast %49 : vector<1x128xf32> to vector<8x128xf32>
    %51 = arith.mulf %41, %50 : vector<8x128xf32>
    %52 = vector.broadcast %7 : vector<1x128xf32> to vector<8x128xf32>
    %53 = arith.mulf %51, %52 : vector<8x128xf32>
    %54 = vector.broadcast %8 : vector<1x128xf32> to vector<8x128xf32>
    %55 = arith.addf %53, %54 : vector<8x128xf32>
    %cst_19 = arith.constant 0.000000e+00 : f32
    %56 = vector.broadcast %cst_19 : f32 to vector<8x128xf32>
    %57 = arith.maximumf %55, %56 : vector<8x128xf32>
    %58 = arith.truncf %57 : vector<8x128xf32> to vector<8x128xbf16>
    %cst_20 = arith.constant dense<0.000000e+00> : vector<8x128xf32>
    %59 = tpu.matmul %58, %2, %cst_20 {dimension_numbers = #tpu.dot_dimension_numbers<[1], [0], [0], [1], [0, 0, 1, 1], [], []>} : vector<8x128xbf16>, vector<128x128xbf16>, vector<8x128xf32> -> vector<8x128xf32>
    %60 = vector.broadcast %4 : vector<1x128xf32> to vector<8x128xf32>
    %61 = arith.addf %59, %60 : vector<8x128xf32>
    %62 = math.tanh %61 : vector<8x128xf32>
    %c0_21 = arith.constant 0 : index
    %c0_22 = arith.constant 0 : index
    %63 = vector.load %arg4[%c0_21, %c0_22] : memref<8x128xf32, #tpu.memory_space<vmem>>, vector<8x128xf32>
    tpu.vector_store %arg4[%c0_21, %c0_22], %62 {strides = array<i32>} : memref<8x128xf32, #tpu.memory_space<vmem>>, vector<8x128xf32>,
    return
  }
  func.func @transform_0(%arg0: i32) -> (i32, i32) {
    %c0_i32 = arith.constant 0 : i32
    %c0_i32_0 = arith.constant 0 : i32
    return %arg0, %c0_i32 : i32, i32
  }
  func.func @transform_1(%arg0: i32) -> (i32, i32) {
    %c0_i32 = arith.constant 0 : i32
    %c0_i32_0 = arith.constant 0 : i32
    %c0_i32_1 = arith.constant 0 : i32
    return %c0_i32, %c0_i32_0 : i32, i32
  }
  func.func @transform_2(%arg0: i32) -> (i32, i32) {
    %c0_i32 = arith.constant 0 : i32
    %c0_i32_0 = arith.constant 0 : i32
    %c0_i32_1 = arith.constant 0 : i32
    return %c0_i32, %c0_i32_0 : i32, i32
  }
  func.func @transform_3(%arg0: i32) -> (i32, i32) {
    %c0_i32 = arith.constant 0 : i32
    %c0_i32_0 = arith.constant 0 : i32
    return %arg0, %c0_i32 : i32, i32
  }
}

</mosaic_0001>

<llo_original>
// kernel: tpu_custom_call.1
$region0: #{tpu_custom_call.1}
  #allocation0 [shape = 'u32[]', space=smem, size = 0x4, offset = 0x4, fixed_abs, tag = 'smem constant byte address 0x4 - core index']
  #allocation1 [shape = 'u32[144,128]{1,0:T(1,128)}', space=vmem, size = 0x12000, scoped, tag = 'internal scratch']
  %s0 = inlined_call_operand.hbm [shape: f32[8,16], index: 0, kind: input, shape index: {}]
  %s1 = inlined_call_operand.hbm [shape: bf16[272,128], index: 1, kind: input, shape index: {}]
  %s2 = inlined_call_operand.hbm [shape: f32[8,128], index: 2, kind: input, shape index: {}]
  %s3 = inlined_call_operand.hbm [shape: f32[8,128], index: 3, kind: output, shape index: {}]
  %s4 = sld [smem:[#allocation0]]
  $region34: #{tpu_custom_call.1} parent=0
    _
  %s6 = ssub.s32 1, %s4
  %s7 = scalar_select 0, %s6, %s4
  $region1: #{tpu_custom_call.1} parent=0
    #allocation2 [shape = 'u8[4096]{0}', space=vmem, size = 0x1000, scoped, tag = 'input window, operand 0, single buffered']
    #allocation3 [shape = 's32[1]{0}', space=sflag, size = 0x4, scoped, tag = 'scoped memory for tpu_custom_call.1']
    #allocation4 [shape = 's32[1]{0}', space=sflag, size = 0x4, scoped, tag = 'scoped memory for tpu_custom_call.1']
    #allocation5 [shape = 'u8[69632]{0}', space=vmem, size = 0x11000, scoped, tag = 'input window, operand 1, single buffered']
    #allocation6 [shape = 's32[1]{0}', space=sflag, size = 0x4, scoped, tag = 'scoped memory for tpu_custom_call.1']
    #allocation7 [shape = 'u8[4096]{0}', space=vmem, size = 0x1000, scoped, tag = 'input window, operand 2, single buffered']
    #allocation8 [shape = 'u8[4096]{0}', space=vmem, size = 0x1000, scoped, tag = 'output window, operand 0, single buffered']
    %8 = vsyncpa [#allocation3], 0
    %9 = vsyncpa [#allocation6], 0
    %10 = vsyncpa [#allocation4], 0
    // Predicated region
    $region2: #{tpu_custom_call.1} parent=1 // pred_check
      _
    $region3: #{tpu_custom_call.1} parent=1 // pred_check_branch
      %12 = sbr.rel (0) target = $region5
    $region4: #{tpu_custom_call.1} parent=1 // pred_region
      %s14 = ssub.s32 128, 128
      %15 = vsyncadd [#allocation3], %s14
      %s17 = sshll.u32 [#allocation2], 4
      %s18 = int_to_ptr.vmem [resolvable:$true] %s17
      %20 = dma.hbm_to_vmem [thread:$0]  %s0, 128, %s18, [#allocation3]
    $region5: #{tpu_custom_call.1} parent=1 // pred_fallthru
      _
    // Predicated region
    $region6: #{tpu_custom_call.1} parent=1 // pred_check
      _
    $region7: #{tpu_custom_call.1} parent=1 // pred_check_branch
      %22 = sbr.rel (0) target = $region9
    $region8: #{tpu_custom_call.1} parent=1 // pred_region
      %s24 = ssub.s32 2176, 2176
      %25 = vsyncadd [#allocation6], %s24
      %s26 = sshll.u32 [#allocation5], 4
      %s27 = int_to_ptr.vmem [resolvable:$true] %s26
      %32 = dma.hbm_to_vmem [thread:$0]  %s1, 2176, %s27, [#allocation6], 64, 64, 4
    $region9: #{tpu_custom_call.1} parent=1 // pred_fallthru
      _
    // Predicated region
    $region10: #{tpu_custom_call.1} parent=1 // pred_check
      _
    $region11: #{tpu_custom_call.1} parent=1 // pred_check_branch
      %34 = sbr.rel (0) target = $region13
    $region12: #{tpu_custom_call.1} parent=1 // pred_region
      %s36 = ssub.s32 128, 128
      %37 = vsyncadd [#allocation6], %s36
      %s39 = sshll.u32 [#allocation7], 4
      %s40 = int_to_ptr.vmem [resolvable:$true] %s39
      %42 = dma.hbm_to_vmem [thread:$0]  %s2, 128, %s40, [#allocation6]
    $region13: #{tpu_custom_call.1} parent=1 // pred_fallthru
      _
    // Predicated region
    $region14: #{tpu_custom_call.1} parent=1 // pred_check
      _
    $region15: #{tpu_custom_call.1} parent=1 // pred_check_branch
      %44 = sbr.rel (0) target = $region17
    $region16: #{tpu_custom_call.1} parent=1 // pred_region
      %45 = dma.done [#allocation3], 128
    $region17: #{tpu_custom_call.1} parent=1 // pred_fallthru
      _
    // Predicated region
    $region18: #{tpu_custom_call.1} parent=1 // pred_check
      _
    $region19: #{tpu_custom_call.1} parent=1 // pred_check_branch
      %47 = sbr.rel (0) target = $region21
    $region20: #{tpu_custom_call.1} parent=1 // pred_region
      %48 = dma.done [#allocation6], 2176
    $region21: #{tpu_custom_call.1} parent=1 // pred_fallthru
      _
    // Predicated region
    $region22: #{tpu_custom_call.1} parent=1 // pred_check
      _
    $region23: #{tpu_custom_call.1} parent=1 // pred_check_branch
      %50 = sbr.rel (0) target = $region25
    $region24: #{tpu_custom_call.1} parent=1 // pred_region
      %51 = dma.done [#allocation6], 128
    $region25: #{tpu_custom_call.1} parent=1 // pred_fallthru
      _
    %v53 = vld [vmem:[#allocation5] sm:$0xf]
    %v54 = vld [vmem:[#allocation5 + $0x4] sm:$0xf]
    %v55 = vld [vmem:[#allocation5 + $0x8] sm:$0xf]
    %v56 = vld [vmem:[#allocation5 + $0xc] sm:$0xf]
    %v57 = vld [vmem:[#allocation5 + $0x10] sm:$0xf]
    %v58 = vld [vmem:[#allocation5 + $0x14] sm:$0xf]
    %v59 = vld [vmem:[#allocation5 + $0x18] sm:$0xf]
    %v60 = vld [vmem:[#allocation5 + $0x1c] sm:$0xf]
    %v61 = vld [vmem:[#allocation5 + $0x20] sm:$0xf]
    %v62 = vld [vmem:[#allocation5 + $0x24] sm:$0xf]
    %v63 = vld [vmem:[#allocation5 + $0x28] sm:$0xf]
    %v64 = vld [vmem:[#allocation5 + $0x2c] sm:$0xf]
    %v65 = vld [vmem:[#allocation5 + $0x30] sm:$0xf]
    %v66 = vld [vmem:[#allocation5 + $0x34] sm:$0xf]
    %v67 = vld [vmem:[#allocation5 + $0x38] sm:$0xf]
    %v68 = vld [vmem:[#allocation5 + $0x3c] sm:$0xf]
    %v69 = vld [vmem:[#allocation5 + $0x40] sm:$0xf]
    %v70 = vld [vmem:[#allocation5 + $0x44] sm:$0xf]
    %v71 = vld [vmem:[#allocation5 + $0x48] sm:$0xf]
    %v72 = vld [vmem:[#allocation5 + $0x4c] sm:$0xf]
    %v73 = vld [vmem:[#allocation5 + $0x50] sm:$0xf]
    %v74 = vld [vmem:[#allocation5 + $0x54] sm:$0xf]
    %v75 = vld [vmem:[#allocation5 + $0x58] sm:$0xf]
    %v76 = vld [vmem:[#allocation5 + $0x5c] sm:$0xf]
    %v77 = vld [vmem:[#allocation5 + $0x60] sm:$0xf]
    %v78 = vld [vmem:[#allocation5 + $0x64] sm:$0xf]
    %v79 = vld [vmem:[#allocation5 + $0x68] sm:$0xf]
    %v80 = vld [vmem:[#allocation5 + $0x6c] sm:$0xf]
    %v81 = vld [vmem:[#allocation5 + $0x70] sm:$0xf]
    %v82 = vld [vmem:[#allocation5 + $0x74] sm:$0xf]
    %v83 = vld [vmem:[#allocation5 + $0x78] sm:$0xf]
    %v84 = vld [vmem:[#allocation5 + $0x7c] sm:$0xf]
    %v85 = vld [vmem:[#allocation5 + $0x80] sm:$0xf]
    %v86 = vld [vmem:[#allocation5 + $0x84] sm:$0xf]
    %v87 = vld [vmem:[#allocation7] sm:$0xff]
    %v88 = vld [vmem:[#allocation2] sm:$0xff]
    %v89 = vpack.c.bf16 %v88, %v88
    %v92 = vunpack.c.l.b16 %v53
    %v93 = vunpack.c.l.b16 %v54
    %v94 = vpack.c.b16 %v93, %v92
    %vm96 = vcmask 130048
    %v98 = vsel %vm96, %v89, 0
    %100 = vmatprep.subr.bf16.mxu0 0
    %101 = vmatpush1.bf16.msra.mxu0 %v94
    %102 = vmatprep.subr.bf16.mxu0 0
    %103 = vmatpush1.bf16.msra.mxu0 0
    %104 = vmatprep.subr.bf16.mxu0 0
    %105 = vmatpush1.bf16.msra.mxu0 0
    %106 = vmatprep.subr.bf16.mxu0 0
    %107 = vmatpush1.bf16.msra.mxu0 0
    %108 = vmatprep.subr.bf16.mxu0 0
    %109 = vmatpush1.bf16.msra.mxu0 0
    %110 = vmatprep.subr.bf16.mxu0 0
    %111 = vmatpush1.bf16.msra.mxu0 0
    %112 = vmatprep.subr.bf16.mxu0 0
    %113 = vmatpush1.bf16.msra.mxu0 0
    %114 = vmatprep.subr.bf16.mxu0 0
    %115 = vmatpush1.bf16.msra.mxu0 0
    %116 = vmatprep.subr.bf16.mxu0 0
    %117 = vmatpush1.bf16.msra.mxu0 0
    %118 = vmatprep.subr.bf16.mxu0 0
    %119 = vmatpush1.bf16.msra.mxu0 0
    %120 = vmatprep.subr.bf16.mxu0 0
    %121 = vmatpush1.bf16.msra.mxu0 0
    %122 = vmatprep.subr.bf16.mxu0 0
    %123 = vmatpush1.bf16.msra.mxu0 0
    %124 = vmatprep.subr.bf16.mxu0 0
    %125 = vmatpush1.bf16.msra.mxu0 0
    %126 = vmatprep.subr.bf16.mxu0 0
    %127 = vmatpush1.bf16.msra.mxu0 0
    %128 = vmatprep.subr.bf16.mxu0 0
    %129 = vmatpush1.bf16.msra.mxu0 0
    %130 = vmatprep.subr.bf16.mxu0 0
    %131 = vmatpush1.bf16.msra.mxu0 0
    %132 = vmatprep.mubr.bf16.mxu0 0
    %133 = vmatmul.mubr.bf16.gmra.mrb[0].mxu0 %v98
    %v134 = vpop.f32.mrb[0].mxu0
    %v135 = vadd.f32 0.0, %v134
    %v136 = vpop.f32.mrb[0].mxu0
    %v137 = vpop.f32.mrb[0].mxu0
    %v138 = vpop.f32.mrb[0].mxu0
    %139 = vdwg.mxu0
    %v140 = vrot.slane %v135, 4
    %v141 = vadd.f32 %v135, %v140
    %v142 = vrot.slane %v141, 2
    %v143 = vadd.f32 %v141, %v142
    %v144 = vrot.slane %v143, 1
    %v145 = vadd.f32 %v143, %v144
    %v146 = vrcp.pop 8.0
    %v147 = vmul.f32 %v145, %v146
    %v148 = vsub.f32 %v135, %v147
    %v149 = vmul.f32 %v148, %v148
    %v150 = vrot.slane %v149, 4
    %v151 = vadd.f32 %v149, %v150
    %v152 = vrot.slane %v151, 2
    %v153 = vadd.f32 %v151, %v152
    %v154 = vrot.slane %v153, 1
    %v155 = vadd.f32 %v153, %v154
    %v156 = vmul.f32 %v155, %v146
    %v157 = vadd.f32 %v156, 1e-05
    %v158 = vrsqrt.pop %v157
    %v159 = vmul.f32 %v148, %v158
    %v160 = vlaneseq
    %v161 = vshrl.u32 %v160, 7
    %v162 = vsub.s32 1, %v161
    %v163 = vrot.slane %v87, %v162
    %v164 = vmul.f32 %v159, %v163
    %v165 = vlaneseq
    %v166 = vshrl.u32 %v165, 7
    %v167 = vsub.s32 2, %v166
    %v168 = vrot.slane %v87, %v167
    %v169 = vadd.f32 %v164, %v168
    %v170 = vmax.f32 %v169, 0.0
    %v171 = vpack.c.bf16 %v170, %v170
    %v188 = vunpack.c.l.b16 %v55
    %v189 = vunpack.c.l.b16 %v56
    %v190 = vunpack.c.l.b16 %v57
    %v191 = vunpack.c.l.b16 %v58
    %v192 = vunpack.c.l.b16 %v59
    %v193 = vunpack.c.l.b16 %v60
    %v194 = vunpack.c.l.b16 %v61
    %v195 = vunpack.c.l.b16 %v62
    %v196 = vunpack.c.l.b16 %v63
    %v197 = vunpack.c.l.b16 %v64
    %v198 = vunpack.c.l.b16 %v65
    %v199 = vunpack.c.l.b16 %v66
    %v200 = vunpack.c.l.b16 %v67
    %v201 = vunpack.c.l.b16 %v68
    %v202 = vunpack.c.l.b16 %v69
    %v203 = vunpack.c.l.b16 %v70
    %v204 = vpack.c.b16 %v189, %v188
    %v205 = vpack.c.b16 %v191, %v190
    %v206 = vpack.c.b16 %v193, %v192
    %v207 = vpack.c.b16 %v195, %v194
    %v208 = vpack.c.b16 %v197, %v196
    %v209 = vpack.c.b16 %v199, %v198
    %v210 = vpack.c.b16 %v201, %v200
    %v211 = vpack.c.b16 %v203, %v202
    %220 = vmatprep.subr.bf16.mxu0 0
    %221 = vmatpush1.bf16.msra.mxu0 %v204
    %222 = vmatprep.subr.bf16.mxu0 0
    %223 = vmatpush1.bf16.msra.mxu0 %v205
    %224 = vmatprep.subr.bf16.mxu0 0
    %225 = vmatpush1.bf16.msra.mxu0 %v206
    %226 = vmatprep.subr.bf16.mxu0 0
    %227 = vmatpush1.bf16.msra.mxu0 %v207
    %228 = vmatprep.subr.bf16.mxu0 0
    %229 = vmatpush1.bf16.msra.mxu0 %v208
    %230 = vmatprep.subr.bf16.mxu0 0
    %231 = vmatpush1.bf16.msra.mxu0 %v209
    %232 = vmatprep.subr.bf16.mxu0 0
    %233 = vmatpush1.bf16.msra.mxu0 %v210
    %234 = vmatprep.subr.bf16.mxu0 0
    %235 = vmatpush1.bf16.msra.mxu0 %v211
    %236 = vmatprep.subr.bf16.mxu0 0
    %237 = vmatpush1.bf16.msra.mxu0 0
    %238 = vmatprep.subr.bf16.mxu0 0
    %239 = vmatpush1.bf16.msra.mxu0 0
    %240 = vmatprep.subr.bf16.mxu0 0
    %241 = vmatpush1.bf16.msra.mxu0 0
    %242 = vmatprep.subr.bf16.mxu0 0
    %243 = vmatpush1.bf16.msra.mxu0 0
    %244 = vmatprep.subr.bf16.mxu0 0
    %245 = vmatpush1.bf16.msra.mxu0 0
    %246 = vmatprep.subr.bf16.mxu0 0
    %247 = vmatpush1.bf16.msra.mxu0 0
    %248 = vmatprep.subr.bf16.mxu0 0
    %249 = vmatpush1.bf16.msra.mxu0 0
    %250 = vmatprep.subr.bf16.mxu0 0
    %251 = vmatpush1.bf16.msra.mxu0 0
    %252 = vmatprep.mubr.bf16.mxu0 0
    %253 = vmatmul.mubr.bf16.gmra.mrb[0].mxu0 %v171
    %v254 = vpop.f32.mrb[0].mxu0
    %v255 = vadd.f32 0.0, %v254
    %v256 = vpop.f32.mrb[0].mxu0
    %v257 = vpop.f32.mrb[0].mxu0
    %v258 = vpop.f32.mrb[0].mxu0
    %259 = vdwg.mxu0
    %v260 = vrot.slane %v255, 4
    %v261 = vadd.f32 %v255, %v260
    %v262 = vrot.slane %v261, 2
    %v263 = vadd.f32 %v261, %v262
    %v264 = vrot.slane %v263, 1
    %v265 = vadd.f32 %v263, %v264
    %v266 = vmul.f32 %v265, %v146
    %v267 = vsub.f32 %v255, %v266
    %v268 = vmul.f32 %v267, %v267
    %v269 = vrot.slane %v268, 4
    %v270 = vadd.f32 %v268, %v269
    %v271 = vrot.slane %v270, 2
    %v272 = vadd.f32 %v270, %v271
    %v273 = vrot.slane %v272, 1
    %v274 = vadd.f32 %v272, %v273
    %v275 = vmul.f32 %v274, %v146
    %v276 = vadd.f32 %v275, 1e-05
    %v277 = vrsqrt.pop %v276
    %v278 = vmul.f32 %v267, %v277
    %v279 = vlaneseq
    %v280 = vshrl.u32 %v279, 7
    %v281 = vsub.s32 3, %v280
    %v282 = vrot.slane %v87, %v281
    %v283 = vmul.f32 %v278, %v282
    %v284 = vlaneseq
    %v285 = vshrl.u32 %v284, 7
    %v286 = vsub.s32 4, %v285
    %v287 = vrot.slane %v87, %v286
    %v288 = vadd.f32 %v283, %v287
    %v289 = vmax.f32 %v288, 0.0
    %v290 = vpack.c.bf16 %v289, %v289
    %v291 = vlaneseq
    %v292 = vshrl.u32 %v291, 7
    %v293 = vsub.s32 0, %v292
    %v294 = vrot.slane %v87, %v293
    %v311 = vunpack.c.l.b16 %v71
    %v312 = vunpack.c.l.b16 %v72
    %v313 = vunpack.c.l.b16 %v73
    %v314 = vunpack.c.l.b16 %v74
    %v315 = vunpack.c.l.b16 %v75
    %v316 = vunpack.c.l.b16 %v76
    %v317 = vunpack.c.l.b16 %v77
    %v318 = vunpack.c.l.b16 %v78
    %v319 = vunpack.c.l.b16 %v79
    %v320 = vunpack.c.l.b16 %v80
    %v321 = vunpack.c.l.b16 %v81
    %v322 = vunpack.c.l.b16 %v82
    %v323 = vunpack.c.l.b16 %v83
    %v324 = vunpack.c.l.b16 %v84
    %v325 = vunpack.c.l.b16 %v85
    %v326 = vunpack.c.l.b16 %v86
    %v327 = vpack.c.b16 %v312, %v311
    %v328 = vpack.c.b16 %v314, %v313
    %v329 = vpack.c.b16 %v316, %v315
    %v330 = vpack.c.b16 %v318, %v317
    %v331 = vpack.c.b16 %v320, %v319
    %v332 = vpack.c.b16 %v322, %v321
    %v333 = vpack.c.b16 %v324, %v323
    %v334 = vpack.c.b16 %v326, %v325
    %343 = vmatprep.subr.bf16.mxu0 0
    %344 = vmatpush1.bf16.msra.mxu0 %v327
    %345 = vmatprep.subr.bf16.mxu0 0
    %346 = vmatpush1.bf16.msra.mxu0 %v328
    %347 = vmatprep.subr.bf16.mxu0 0
    %348 = vmatpush1.bf16.msra.mxu0 %v329
    %349 = vmatprep.subr.bf16.mxu0 0
    %350 = vmatpush1.bf16.msra.mxu0 %v330
    %351 = vmatprep.subr.bf16.mxu0 0
    %352 = vmatpush1.bf16.msra.mxu0 %v331
    %353 = vmatprep.subr.bf16.mxu0 0
    %354 = vmatpush1.bf16.msra.mxu0 %v332
    %355 = vmatprep.subr.bf16.mxu0 0
    %356 = vmatpush1.bf16.msra.mxu0 %v333
    %357 = vmatprep.subr.bf16.mxu0 0
    %358 = vmatpush1.bf16.msra.mxu0 %v334
    %359 = vmatprep.subr.bf16.mxu0 0
    %360 = vmatpush1.bf16.msra.mxu0 0
    %361 = vmatprep.subr.bf16.mxu0 0
    %362 = vmatpush1.bf16.msra.mxu0 0
    %363 = vmatprep.subr.bf16.mxu0 0
    %364 = vmatpush1.bf16.msra.mxu0 0
    %365 = vmatprep.subr.bf16.mxu0 0
    %366 = vmatpush1.bf16.msra.mxu0 0
    %367 = vmatprep.subr.bf16.mxu0 0
    %368 = vmatpush1.bf16.msra.mxu0 0
    %369 = vmatprep.subr.bf16.mxu0 0
    %370 = vmatpush1.bf16.msra.mxu0 0
    %371 = vmatprep.subr.bf16.mxu0 0
    %372 = vmatpush1.bf16.msra.mxu0 0
    %373 = vmatprep.subr.bf16.mxu0 0
    %374 = vmatpush1.bf16.msra.mxu0 0
    %375 = vmatprep.mubr.bf16.mxu0 0
    %376 = vmatmul.mubr.bf16.gmra.mrb[0].mxu0 %v290
    %v377 = vpop.f32.mrb[0].mxu0
    %v378 = vadd.f32 %v294, %v377
    %v379 = vpop.f32.mrb[0].mxu0
    %v380 = vpop.f32.mrb[0].mxu0
    %v381 = vpop.f32.mrb[0].mxu0
    %382 = vdwg.mxu0
    %v383 = vtanh.pop %v378
    %384 = vst [vmem:[#allocation8] sm:$0xff] %v383
    // Predicated region
    $region26: #{tpu_custom_call.1} parent=1 // pred_check
      _
    $region27: #{tpu_custom_call.1} parent=1 // pred_check_branch
      %386 = sbr.rel (0) target = $region29
    $region28: #{tpu_custom_call.1} parent=1 // pred_region
      %s388 = ssub.s32 128, 128
      %389 = vsyncadd [#allocation4], %s388
      %s391 = sshll.u32 [#allocation8], 4
      %s392 = int_to_ptr.vmem [resolvable:$true] %s391
      %394 = dma.vmem_to_hbm [thread:$0]  %s392, 128, %s3, [#allocation4]
    $region29: #{tpu_custom_call.1} parent=1 // pred_fallthru
      _
    // Predicated region
    $region30: #{tpu_custom_call.1} parent=1 // pred_check
      _
    $region31: #{tpu_custom_call.1} parent=1 // pred_check_branch
      %396 = sbr.rel (0) target = $region33
    $region32: #{tpu_custom_call.1} parent=1 // pred_region
      %397 = dma.done [#allocation4], 128
    $region33: #{tpu_custom_call.1} parent=1 // pred_fallthru
      _
    %398 = vsyncpa [#allocation3], 1
    %399 = vsyncpa [#allocation6], 1
    %400 = vsyncpa [#allocation4], 1

</llo_original>
